<compile_context>
chip_gen: v7x
topology: tpu7x:2x2x1
jax: 0.10.0
libtpu: 0.0.40
codegen_flags: <defaults>
</compile_context>

<pallas_src>
import functools
import math

import jax
import jax.numpy as jnp
from jax.experimental import pallas as pl
from jax.experimental.pallas import tpu as pltpu


def _leaky_relu(x, slope=0.2):
    # Equals torch.nn.LeakyReLU(slope) for 0 < slope < 1; pure VPU op.
    return jnp.maximum(x, slope * x)


def _make_res_stack_kernel(d: int):
    """Fused ResStack kernel for one [C, Tt] time tile of one batch element."""

    def kernel(x_ref, halo_ref, w1_ref, b1_ref, w23_ref, b23_ref, o_ref):
        # x_ref   : [1, C, Tt]     un-padded input tile (time on lanes)
        # halo_ref: [1, 1, C, 2d]  [left halo | right halo] columns (reflection-aware)
        # w1_ref  : [C, 3C]        dilated k=3 conv, taps concatenated along Cin
        # b1_ref  : [C, 1]         f32 bias of the dilated conv
        # w23_ref : [C, 2C]        [shortcut 1x1 | block-tail 1x1] concatenated along Cin
        # b23_ref : [C, 1]         f32 combined bias (b_shortcut + b_tail)
        # o_ref   : [1, C, Tt]
        Tt = x_ref.shape[-1]
        x = x_ref[0]                                   # [C, Tt], activation dtype
        halo = halo_ref[0, 0]                          # [C, 2d]

        # LeakyReLU commutes with reflection padding (elementwise vs. copy).
        a = _leaky_relu(x)                             # [C, Tt]
        a_l = _leaky_relu(halo[:, :d])                 # [C, d]  left halo
        a_r = _leaky_relu(halo[:, d:])                 # [C, d]  right halo

        # The three dilated-tap windows of the padded activation for this tile.
        win0 = jnp.concatenate([a_l, a[:, : Tt - d]], axis=-1)   # shift -d
        win2 = jnp.concatenate([a[:, d:], a_r], axis=-1)         # shift +d
        taps = jnp.concatenate([win0, a, win2], axis=0)          # [3C, Tt]

        # Dilated k=3 conv as ONE MXU dot (f32 accumulation), + bias, + LeakyReLU.
        h = jnp.dot(w1_ref[...], taps, preferred_element_type=jnp.float32)
        h = _leaky_relu(h + b1_ref[...])                          # [C, Tt] f32

        # Shortcut 1x1 + block-tail 1x1 + residual add as ONE dot with fused bias.
        yin = jnp.concatenate([x, h.astype(x.dtype)], axis=0)     # [2C, Tt]
        y = jnp.dot(w23_ref[...], yin, preferred_element_type=jnp.float32)
        y = y + b23_ref[...]

        o_ref[0] = y.astype(o_ref.dtype)

    return kernel


def _weight_norm(v, g):
    """torch.nn.utils.weight_norm (dim=0): w = g * v / ||v|| per output channel."""
    norm = jnp.sqrt(jnp.sum(v * v, axis=(1, 2), keepdims=True))
    return (g[:, None, None] / norm) * v


def _vmem_estimate_bytes(C, Tt, d, itemsize):
    act = C * Tt * itemsize                         # one activation tile
    halo = C * 2 * d * itemsize
    wgt = 5 * C * C * itemsize + 2 * C * 4          # [C,3C] + [C,2C] + biases
    interm = 9 * C * Tt * 4                         # f32 intermediates (generous)
    return 2 * (2 * act + halo + wgt) + interm      # double-buffered in/out + scratch


def _pick_time_tile(T, C, d, itemsize, max_time_tile, budget=40 * 2**20):
    """Largest lane-aligned time tile that divides T and fits the VMEM budget."""
    if T <= max_time_tile and _vmem_estimate_bytes(C, T, d, itemsize) <= budget:
        return T
    best = None
    top = min(T - 1, max_time_tile)
    for Tt in range(128, top + 1, 128):
        if T % Tt == 0 and _vmem_estimate_bytes(C, Tt, d, itemsize) <= budget:
            best = Tt
    return best if best is not None else T


@functools.partial(jax.jit, static_argnames=("dilation", "max_time_tile"))
def res_stack_forward(x, params, *, dilation: int = 1, max_time_tile: int = 2048):
    """ResStack forward. x: [B, C, T] (NCW, like PyTorch Conv1d) -> [B, C, T]."""
    B, C, T = x.shape
    d = dilation
    assert d >= 1, "dilation must be >= 1"
    assert T > d, "ReflectionPad1d requires T > padding (= dilation)"

    # ---- fold weight-norm into effective conv weights; build fused weights ----
    w1 = _weight_norm(params["conv1"]["v"], params["conv1"]["g"])          # [C, C, 3]
    w2 = _weight_norm(params["conv2"]["v"], params["conv2"]["g"])[:, :, 0]  # [C, C]
    w3 = _weight_norm(params["conv3"]["v"], params["conv3"]["g"])[:, :, 0]  # [C, C]
    # Taps concatenated along Cin: W1f[:, k*C + c] = w1[:, c, k]
    w1_fused = jnp.transpose(w1, (0, 2, 1)).reshape(C, 3 * C).astype(x.dtype)
    # Shortcut + block-tail fused: rows [x; h] get [w3 | w2]
    w23 = jnp.concatenate([w3, w2], axis=1).astype(x.dtype)                # [C, 2C]
    b1 = params["conv1"]["b"].astype(jnp.float32).reshape(C, 1)
    b23 = (params["conv2"]["b"] + params["conv3"]["b"]).astype(jnp.float32).reshape(C, 1)

    # ---- time tiling ----
    itemsize = jnp.dtype(x.dtype).itemsize
    Tt = _pick_time_tile(T, C, d, itemsize, max_time_tile)
    assert Tt > d, "time tile must exceed the dilation"
    nT = T // Tt
    assert nT * Tt == T

    # ---- per-tile reflection halos (reads only 2*d*nT columns of x) ----
    starts = jnp.arange(nT, dtype=jnp.int32) * Tt                 # [nT]
    offs = jnp.arange(d, dtype=jnp.int32)                         # [d]
    left_cols = starts[:, None] - d + offs[None, :]               # [nT, d]
    right_cols = starts[:, None] + Tt + offs[None, :]             # [nT, d]
    cols = jnp.concatenate([left_cols, right_cols], axis=1)       # [nT, 2d]
    cols = jnp.where(cols < 0, -cols, cols)                       # reflect left edge
    cols = jnp.where(cols >= T, 2 * (T - 1) - cols, cols)         # reflect right edge
    halos = jnp.take(x, cols.reshape(-1), axis=2)                 # [B, C, nT*2d]
    halos = halos.reshape(B, C, nT, 2 * d).transpose(0, 2, 1, 3)  # [B, nT, C, 2d]

    vmem_limit = int(min(64 * 2**20,
                         max(32 * 2**20, 2 * _vmem_estimate_bytes(C, Tt, d, itemsize))))

    kernel = _make_res_stack_kernel(d)
    return pl.pallas_call(
        kernel,
        out_shape=jax.ShapeDtypeStruct((B, C, T), x.dtype),
        grid=(B, nT),
        in_specs=[
            pl.BlockSpec((1, C, Tt), lambda b, t: (b, 0, t)),        # activation tile
            pl.BlockSpec((1, 1, C, 2 * d), lambda b, t: (b, t, 0, 0)),  # halo tile
            pl.BlockSpec((C, 3 * C), lambda b, t: (0, 0)),           # fused dilated-conv W
            pl.BlockSpec((C, 1), lambda b, t: (0, 0)),               # b1
            pl.BlockSpec((C, 2 * C), lambda b, t: (0, 0)),           # fused 1x1 W
            pl.BlockSpec((C, 1), lambda b, t: (0, 0)),               # b2 + b3
        ],
        out_specs=pl.BlockSpec((1, C, Tt), lambda b, t: (b, 0, t)),
        compiler_params=pltpu.CompilerParams(
            dimension_semantics=("parallel", "parallel"),
            vmem_limit_bytes=vmem_limit,
        ),
    )(x, halos, w1_fused, b1, w23, b23)


def init_res_stack_params(key, feature_count: int):
    """PyTorch-style Conv1d init (U[-1/sqrt(fan_in), +]) with weight_norm params (v, g, b)."""
    C = feature_count

    def conv_init(k, cout, cin, ksize):
        kv, kb = jax.random.split(k)
        bound = 1.0 / math.sqrt(cin * ksize)
        v = jax.random.uniform(kv, (cout, cin, ksize), jnp.float32, -bound, bound)
        b = jax.random.uniform(kb, (cout,), jnp.float32, -bound, bound)
        g = jnp.sqrt(jnp.sum(v * v, axis=(1, 2)))      # weight_norm init: g = ||v||
        return {"v": v, "g": g, "b": b}

    k1, k2, k3 = jax.random.split(key, 3)
    return {
        "conv1": conv_init(k1, C, C, 3),   # dilated k=3 conv in the block
        "conv2": conv_init(k2, C, C, 1),   # block tail 1x1 conv
        "conv3": conv_init(k3, C, C, 1),   # shortcut 1x1 conv
    }


# ------------------ pure-JAX reference (verification only) ------------------
def _ref_forward(x, params, dilation):
    d = dilation
    B, C, T = x.shape
    w1 = _weight_norm(params["conv1"]["v"], params["conv1"]["g"])
    w2 = _weight_norm(params["conv2"]["v"], params["conv2"]["g"])[:, :, 0]
    w3 = _weight_norm(params["conv3"]["v"], params["conv3"]["g"])[:, :, 0]
    b1, b2, b3 = params["conv1"]["b"], params["conv2"]["b"], params["conv3"]["b"]

    sc = jnp.einsum("oc,bct->bot", w3, x) + b3[None, :, None]

    a = jnp.where(x >= 0, x, 0.2 * x)                       # LeakyReLU(0.2)
    ap = jnp.pad(a, ((0, 0), (0, 0), (d, d)), mode="reflect")
    y1 = b1[None, :, None]
    for k in range(3):
        y1 = y1 + jnp.einsum("oc,bct->bot", w1[:, :, k], ap[:, :, k * d: k * d + T])
    h = jnp.where(y1 >= 0, y1, 0.2 * y1)
    blk = jnp.einsum("oc,bct->bot", w2, h) + b2[None, :, None]
    return sc + blk


if __name__ == "__main__":
    key = jax.random.PRNGKey(0)
    key, kx1, kx2 = jax.random.split(key, 3)
    C = 8
    dilation = 3
    params = init_res_stack_params(key, C)

    # Case 1: multi time-tile path (grid=(B, nT) with nT=2) — exercises
    # tile-boundary halos and sequence-edge reflection.
    B1, T1 = 2, 256
    x1 = jax.random.normal(kx1, (B1, C, T1), jnp.float32)
    y1 = jax.block_until_ready(
        res_stack_forward(x1, params, dilation=dilation, max_time_tile=128))
    y1_ref = _ref_forward(x1, params, dilation)
    assert y1.shape == (B1, C, T1), y1.shape
    err1 = float(jnp.max(jnp.abs(y1 - y1_ref)))
    assert jnp.allclose(y1, y1_ref, atol=1e-4, rtol=1e-4), err1

    # Case 2: single-tile path with the default tile chooser.
    B2, T2 = 2, 128
    x2 = jax.random.normal(kx2, (B2, C, T2), jnp.float32)
    y2 = jax.block_until_ready(res_stack_forward(x2, params, dilation=dilation))
    y2_ref = _ref_forward(x2, params, dilation)
    assert y2.shape == (B2, C, T2), y2.shape
    err2 = float(jnp.max(jnp.abs(y2 - y2_ref)))
    assert jnp.allclose(y2, y2_ref, atol=1e-4, rtol=1e-4), err2

    print("KERNEL_OK")
</pallas_src>

<mosaic_0001>
module attributes {stable_mosaic.version = 11 : i64} {
  func.func @kernel(%arg0: i32, %arg1: i32, %arg2: memref<1x8x128xf32, #tpu.memory_space<vmem>>, %arg3: memref<1x1x8x6xf32, #tpu.memory_space<vmem>>, %arg4: memref<8x24xf32, #tpu.memory_space<vmem>>, %arg5: memref<8x1xf32, #tpu.memory_space<vmem>>, %arg6: memref<8x16xf32, #tpu.memory_space<vmem>>, %arg7: memref<8x1xf32, #tpu.memory_space<vmem>>, %arg8: memref<1x8x128xf32, #tpu.memory_space<vmem>>) attributes {dimension_semantics = [#tpu.dimension_semantics<parallel>, #tpu.dimension_semantics<parallel>], iteration_bounds = array<i64: 2, 2>, scalar_prefetch = 0 : i64, scratch_operands = 0 : i64, tpu.core_type = #tpu.core_type<tc>, window_params = [{transform_indices = @transform_0, window_bounds = array<i64: 1, 8, 128>}, {transform_indices = @transform_1, window_bounds = array<i64: 1, 1, 8, 6>}, {pipeline_mode = #tpu.pipeline_mode<synchronous>, transform_indices = @transform_2, window_bounds = array<i64: 8, 24>}, {pipeline_mode = #tpu.pipeline_mode<synchronous>, transform_indices = @transform_3, window_bounds = array<i64: 8, 1>}, {pipeline_mode = #tpu.pipeline_mode<synchronous>, transform_indices = @transform_4, window_bounds = array<i64: 8, 16>}, {pipeline_mode = #tpu.pipeline_mode<synchronous>, transform_indices = @transform_5, window_bounds = array<i64: 8, 1>}, {transform_indices = @transform_6, window_bounds = array<i64: 1, 8, 128>}]} {
    %c0 = arith.constant 0 : index
    %c0_0 = arith.constant 0 : index
    %c0_1 = arith.constant 0 : index
    %0 = vector.load %arg2[%c0, %c0_0, %c0_1] : memref<1x8x128xf32, #tpu.memory_space<vmem>>, vector<1x8x128xf32>
    %1 = vector.shape_cast %0 : vector<1x8x128xf32> to vector<8x128xf32>
    %c0_2 = arith.constant 0 : index
    %c0_3 = arith.constant 0 : index
    %c0_4 = arith.constant 0 : index
    %c0_5 = arith.constant 0 : index
    %2 = vector.load %arg3[%c0_2, %c0_3, %c0_4, %c0_5] : memref<1x1x8x6xf32, #tpu.memory_space<vmem>>, vector<1x1x8x6xf32>
    %3 = vector.shape_cast %2 : vector<1x1x8x6xf32> to vector<8x6xf32>
    %cst = arith.constant 2.000000e-01 : f32
    %4 = vector.broadcast %cst : f32 to vector<8x128xf32>
    %5 = arith.mulf %4, %1 : vector<8x128xf32>
    %6 = arith.maximumf %1, %5 : vector<8x128xf32>
    %7 = vector.extract_strided_slice %3 {offsets = [0, 0], sizes = [8, 3], strides = [1, 1]} : vector<8x6xf32> to vector<8x3xf32>
    %cst_6 = arith.constant 2.000000e-01 : f32
    %8 = vector.broadcast %cst_6 : f32 to vector<8x3xf32>
    %9 = arith.mulf %8, %7 : vector<8x3xf32>
    %10 = arith.maximumf %7, %9 : vector<8x3xf32>
    %11 = vector.extract_strided_slice %3 {offsets = [0, 3], sizes = [8, 3], strides = [1, 1]} : vector<8x6xf32> to vector<8x3xf32>
    %cst_7 = arith.constant 2.000000e-01 : f32
    %12 = vector.broadcast %cst_7 : f32 to vector<8x3xf32>
    %13 = arith.mulf %12, %11 : vector<8x3xf32>
    %14 = arith.maximumf %11, %13 : vector<8x3xf32>
    %15 = vector.extract_strided_slice %6 {offsets = [0, 0], sizes = [8, 125], strides = [1, 1]} : vector<8x128xf32> to vector<8x125xf32>
    %16 = tpu.concatenate %10, %15 in 1 : vector<8x3xf32>, vector<8x125xf32> -> vector<8x128xf32>
    %17 = vector.extract_strided_slice %6 {offsets = [0, 3], sizes = [8, 125], strides = [1, 1]} : vector<8x128xf32> to vector<8x125xf32>
    %18 = tpu.concatenate %17, %14 in 1 : vector<8x125xf32>, vector<8x3xf32> -> vector<8x128xf32>
    %19 = tpu.concatenate %16, %6, %18 in 0 : vector<8x128xf32>, vector<8x128xf32>, vector<8x128xf32> -> vector<24x128xf32>
    %c0_8 = arith.constant 0 : index
    %c0_9 = arith.constant 0 : index
    %20 = vector.load %arg4[%c0_8, %c0_9] : memref<8x24xf32, #tpu.memory_space<vmem>>, vector<8x24xf32>
    %cst_10 = arith.constant dense<0.000000e+00> : vector<8x128xf32>
    %21 = tpu.matmul %20, %19, %cst_10 {dimension_numbers = #tpu.dot_dimension_numbers<[1], [0], [0], [1], [0, 0, 1, 1], [], []>} : vector<8x24xf32>, vector<24x128xf32>, vector<8x128xf32> -> vector<8x128xf32>
    %c0_11 = arith.constant 0 : index
    %c0_12 = arith.constant 0 : index
    %22 = vector.load %arg5[%c0_11, %c0_12] : memref<8x1xf32, #tpu.memory_space<vmem>>, vector<8x1xf32>
    %23 = vector.broadcast %22 : vector<8x1xf32> to vector<8x128xf32>
    %24 = arith.addf %21, %23 : vector<8x128xf32>
    %cst_13 = arith.constant 2.000000e-01 : f32
    %25 = vector.broadcast %cst_13 : f32 to vector<8x128xf32>
    %26 = arith.mulf %25, %24 : vector<8x128xf32>
    %27 = arith.maximumf %24, %26 : vector<8x128xf32>
    %28 = tpu.concatenate %1, %27 in 0 : vector<8x128xf32>, vector<8x128xf32> -> vector<16x128xf32>
    %c0_14 = arith.constant 0 : index
    %c0_15 = arith.constant 0 : index
    %29 = vector.load %arg6[%c0_14, %c0_15] : memref<8x16xf32, #tpu.memory_space<vmem>>, vector<8x16xf32>
    %cst_16 = arith.constant dense<0.000000e+00> : vector<8x128xf32>
    %30 = tpu.matmul %29, %28, %cst_16 {dimension_numbers = #tpu.dot_dimension_numbers<[1], [0], [0], [1], [0, 0, 1, 1], [], []>} : vector<8x16xf32>, vector<16x128xf32>, vector<8x128xf32> -> vector<8x128xf32>
    %c0_17 = arith.constant 0 : index
    %c0_18 = arith.constant 0 : index
    %31 = vector.load %arg7[%c0_17, %c0_18] : memref<8x1xf32, #tpu.memory_space<vmem>>, vector<8x1xf32>
    %32 = vector.broadcast %31 : vector<8x1xf32> to vector<8x128xf32>
    %33 = arith.addf %30, %32 : vector<8x128xf32>
    %c0_19 = arith.constant 0 : index
    %c0_20 = arith.constant 0 : index
    %c0_21 = arith.constant 0 : index
    %34 = vector.load %arg8[%c0_19, %c0_20, %c0_21] : memref<1x8x128xf32, #tpu.memory_space<vmem>>, vector<1x8x128xf32>
    %35 = vector.shape_cast %34 : vector<1x8x128xf32> to vector<8x128xf32>
    %36 = vector.shape_cast %33 : vector<8x128xf32> to vector<1x8x128xf32>
    tpu.vector_store %arg8[%c0_19, %c0_20, %c0_21], %36 {strides = array<i32>} : memref<1x8x128xf32, #tpu.memory_space<vmem>>, vector<1x8x128xf32>,
    return
  }
  func.func @transform_0(%arg0: i32, %arg1: i32) -> (i32, i32, i32) {
    %c0_i32 = arith.constant 0 : i32
    %c0_i32_0 = arith.constant 0 : i32
    return %arg0, %c0_i32, %arg1 : i32, i32, i32
  }
  func.func @transform_1(%arg0: i32, %arg1: i32) -> (i32, i32, i32, i32) {
    %c0_i32 = arith.constant 0 : i32
    %c0_i32_0 = arith.constant 0 : i32
    %c0_i32_1 = arith.constant 0 : i32
    return %arg0, %arg1, %c0_i32, %c0_i32_0 : i32, i32, i32, i32
  }
  func.func @transform_2(%arg0: i32, %arg1: i32) -> (i32, i32) {
    %c0_i32 = arith.constant 0 : i32
    %c0_i32_0 = arith.constant 0 : i32
    %c0_i32_1 = arith.constant 0 : i32
    return %c0_i32, %c0_i32_0 : i32, i32
  }
  func.func @transform_3(%arg0: i32, %arg1: i32) -> (i32, i32) {
    %c0_i32 = arith.constant 0 : i32
    %c0_i32_0 = arith.constant 0 : i32
    %c0_i32_1 = arith.constant 0 : i32
    return %c0_i32, %c0_i32_0 : i32, i32
  }
  func.func @transform_4(%arg0: i32, %arg1: i32) -> (i32, i32) {
    %c0_i32 = arith.constant 0 : i32
    %c0_i32_0 = arith.constant 0 : i32
    %c0_i32_1 = arith.constant 0 : i32
    return %c0_i32, %c0_i32_0 : i32, i32
  }
  func.func @transform_5(%arg0: i32, %arg1: i32) -> (i32, i32) {
    %c0_i32 = arith.constant 0 : i32
    %c0_i32_0 = arith.constant 0 : i32
    %c0_i32_1 = arith.constant 0 : i32
    return %c0_i32, %c0_i32_0 : i32, i32
  }
  func.func @transform_6(%arg0: i32, %arg1: i32) -> (i32, i32, i32) {
    %c0_i32 = arith.constant 0 : i32
    %c0_i32_0 = arith.constant 0 : i32
    return %arg0, %c0_i32, %arg1 : i32, i32, i32
  }
}

</mosaic_0001>

<llo_original>
// kernel: res_stack_forward.1
$region0: #{res_stack_forward.1}
  #allocation0 [shape = 'u32[]', space=smem, size = 0x4, offset = 0x4, fixed_abs, tag = 'smem constant byte address 0x4 - core index']
  #allocation1 [shape = 'u32[144,128]{1,0:T(1,128)}', space=vmem, size = 0x12000, scoped, tag = 'internal scratch']
  %s0 = inlined_call_operand.vmem [shape: f32[2,8,256], index: 0, kind: input, shape index: {}]
  %s1 = inlined_call_operand.vmem [shape: f32[2,2,8,6], index: 1, kind: input, shape index: {}]
  %s2 = inlined_call_operand.vmem [shape: f32[8,24], index: 2, kind: input, shape index: {}]
  %s3 = inlined_call_operand.vmem [shape: f32[8,1], index: 3, kind: input, shape index: {}]
  %s4 = inlined_call_operand.vmem [shape: f32[8,16], index: 4, kind: input, shape index: {}]
  %s5 = inlined_call_operand.vmem [shape: f32[8,1], index: 5, kind: input, shape index: {}]
  %s6 = inlined_call_operand.hbm [shape: f32[2,8,256], index: 6, kind: output, shape index: {}]
  %s7 = sld [smem:[#allocation0]]
  $region57: #{res_stack_forward.1} parent=0
    _
  %s9 = ssub.s32 1, %s7
  %s10 = scalar_select 0, %s9, %s7
  $region1: #{res_stack_forward.1} parent=0
    #allocation2 [shape = 'u8[8192]{0}', space=vmem, size = 0x2000, scoped, tag = 'output window, operand 0']
    #allocation3 [shape = 's32[2]{0}', space=sflag, size = 0x8, scoped, tag = 'scoped memory for res_stack_forward.1']
    %11 = vsyncpa [#allocation3], 0
    %s12 = scalar_lea.sflag [#allocation3], 1
    %13 = vsyncpa %s12, 0
    loop: start=0, step=1, limit=6
    $region2: #{res_stack_forward.1} parent=1 // loop_pre_header
      _
    $region3: #{res_stack_forward.1} parent=1 // loop_header
      %s15 = sphi 0, %s19
      %p16 = scmp.ge.s32.totalorder %s15, 6
      %s22 = sphi 0, %s34
      %s23 = sphi 0, %s30
      %s24 = sphi 0, %s22
      %s25 = sphi 0, %s23
      %s26 = sphi 0, %s24
      %s27 = sphi 0, %s25
      %s39 = sphi 0, %s41
      %s42 = sphi 0, %s39
      %s43 = sphi 0, %s42
      %s59 = sphi 0, %s43
      %s67 = sphi 0, %s69
      %s70 = sphi 0, %s67
      %s71 = sphi 0, %s70
      %s87 = sphi 0, %s71
      %s91 = sphi 0, %s91
      %s93 = sphi 0, %s91
      %s94 = sphi 0, %s93
      %s108 = sphi 0, %s94
      %s112 = sphi 0, %s112
      %s114 = sphi 0, %s112
      %s115 = sphi 0, %s114
      %s129 = sphi 0, %s115
      %s133 = sphi 0, %s133
      %s135 = sphi 0, %s133
      %s136 = sphi 0, %s135
      %s150 = sphi 0, %s136
      %s154 = sphi 0, %s154
      %s156 = sphi 0, %s154
      %s157 = sphi 0, %s156
      %s171 = sphi 0, %s157
      %s179 = sphi 0, %s181
      %s182 = sphi 0, %s179
      %s183 = sphi 0, %s182
      %s199 = sphi 0, %s183
    $region4: #{res_stack_forward.1} parent=1 // loop_header_branch
      %18 = sbr.rel (%p16) target = $region8
    $region5: #{res_stack_forward.1} parent=1 // loop_body
      %s20 = ssub.s32 %s15, 1
      %s21 = ssub.s32 %s15, 2
      %s28 = sadd.s32 1, %s23
      %p29 = scmp.ge.s32.totalorder %s28, 2
      %s30 = scalar_select %p29, 0, %s28
      %s31 = sadd.s32 1, %s22
      %s32 = scalar_select %p29, %s31, %s22
      %p33 = scmp.ge.s32.totalorder %s32, 2
      %s34 = scalar_select %p33, 0, %s32
      %s35 = ssub.s32 %s22, %s34
      %s36 = ssub.s32 %s23, %s30
      %s37 = sor.u32 %s35, %s36
      %p38 = scmp.eq.s32.totalorder %s37, 0
      %s40 = sadd.s32 %s39, 1
      %s41 = scalar_select %p38, %s39, %s40
      %p44 = pneg %p38
      %p45 = scmp.eq.s32.totalorder %s15, 3
      %p46 = por %p44, %p45
      %p47 = scmp.ne.s32.totalorder %s39, %s42
      %p48 = scmp.eq.s32.totalorder %s15, 0
      %p49 = por %p47, %p48
      %p50 = scmp.ne.s32.totalorder %s39, %s42
      %p51 = scmp.eq.s32.totalorder %s20, 3
      %p52 = por %p50, %p51
      %p53 = scmp.ne.s32.totalorder %s42, %s43
      %p54 = scmp.eq.s32.totalorder %s20, 0
      %p55 = por %p53, %p54
      %p56 = scmp.ne.s32.totalorder %s42, %s43
      %p57 = scmp.eq.s32.totalorder %s21, 3
      %p58 = por %p56, %p57
      %p60 = scmp.ne.s32.totalorder %s43, %s59
      %p61 = scmp.eq.s32.totalorder %s21, 0
      %p62 = por %p60, %p61
      %s63 = ssub.s32 %s22, %s34
      %s64 = ssub.s32 %s23, %s30
      %s65 = sor.u32 %s63, %s64
      %p66 = scmp.eq.s32.totalorder %s65, 0
      %s68 = sadd.s32 %s67, 1
      %s69 = scalar_select %p66, %s67, %s68
      %p72 = pneg %p66
      %p73 = scmp.eq.s32.totalorder %s15, 3
      %p74 = por %p72, %p73
      %p75 = scmp.ne.s32.totalorder %s67, %s70
      %p76 = scmp.eq.s32.totalorder %s15, 0
      %p77 = por %p75, %p76
      %p78 = scmp.ne.s32.totalorder %s67, %s70
      %p79 = scmp.eq.s32.totalorder %s20, 3
      %p80 = por %p78, %p79
      %p81 = scmp.ne.s32.totalorder %s70, %s71
      %p82 = scmp.eq.s32.totalorder %s20, 0
      %p83 = por %p81, %p82
      %p84 = scmp.ne.s32.totalorder %s70, %s71
      %p85 = scmp.eq.s32.totalorder %s21, 3
      %p86 = por %p84, %p85
      %p88 = scmp.ne.s32.totalorder %s71, %s87
      %p89 = scmp.eq.s32.totalorder %s21, 0
      %p90 = por %p88, %p89
      %s92 = sadd.s32 %s91, 1
      %p95 = scmp.eq.s32.totalorder %s15, 3
      %p96 = scmp.ne.s32.totalorder %s91, %s93
      %p97 = scmp.eq.s32.totalorder %s15, 0
      %p98 = por %p96, %p97
      %p99 = scmp.ne.s32.totalorder %s91, %s93
      %p100 = scmp.eq.s32.totalorder %s20, 3
      %p101 = por %p99, %p100
      %p102 = scmp.ne.s32.totalorder %s93, %s94
      %p103 = scmp.eq.s32.totalorder %s20, 0
      %p104 = por %p102, %p103
      %p105 = scmp.ne.s32.totalorder %s93, %s94
      %p106 = scmp.eq.s32.totalorder %s21, 3
      %p107 = por %p105, %p106
      %p109 = scmp.ne.s32.totalorder %s94, %s108
      %p110 = scmp.eq.s32.totalorder %s21, 0
      %p111 = por %p109, %p110
      %s113 = sadd.s32 %s112, 1
      %p116 = scmp.eq.s32.totalorder %s15, 3
      %p117 = scmp.ne.s32.totalorder %s112, %s114
      %p118 = scmp.eq.s32.totalorder %s15, 0
      %p119 = por %p117, %p118
      %p120 = scmp.ne.s32.totalorder %s112, %s114
      %p121 = scmp.eq.s32.totalorder %s20, 3
      %p122 = por %p120, %p121
      %p123 = scmp.ne.s32.totalorder %s114, %s115
      %p124 = scmp.eq.s32.totalorder %s20, 0
      %p125 = por %p123, %p124
      %p126 = scmp.ne.s32.totalorder %s114, %s115
      %p127 = scmp.eq.s32.totalorder %s21, 3
      %p128 = por %p126, %p127
      %p130 = scmp.ne.s32.totalorder %s115, %s129
      %p131 = scmp.eq.s32.totalorder %s21, 0
      %p132 = por %p130, %p131
      %s134 = sadd.s32 %s133, 1
      %p137 = scmp.eq.s32.totalorder %s15, 3
      %p138 = scmp.ne.s32.totalorder %s133, %s135
      %p139 = scmp.eq.s32.totalorder %s15, 0
      %p140 = por %p138, %p139
      %p141 = scmp.ne.s32.totalorder %s133, %s135
      %p142 = scmp.eq.s32.totalorder %s20, 3
      %p143 = por %p141, %p142
      %p144 = scmp.ne.s32.totalorder %s135, %s136
      %p145 = scmp.eq.s32.totalorder %s20, 0
      %p146 = por %p144, %p145
      %p147 = scmp.ne.s32.totalorder %s135, %s136
      %p148 = scmp.eq.s32.totalorder %s21, 3
      %p149 = por %p147, %p148
      %p151 = scmp.ne.s32.totalorder %s136, %s150
      %p152 = scmp.eq.s32.totalorder %s21, 0
      %p153 = por %p151, %p152
      %s155 = sadd.s32 %s154, 1
      %p158 = scmp.eq.s32.totalorder %s15, 3
      %p159 = scmp.ne.s32.totalorder %s154, %s156
      %p160 = scmp.eq.s32.totalorder %s15, 0
      %p161 = por %p159, %p160
      %p162 = scmp.ne.s32.totalorder %s154, %s156
      %p163 = scmp.eq.s32.totalorder %s20, 3
      %p164 = por %p162, %p163
      %p165 = scmp.ne.s32.totalorder %s156, %s157
      %p166 = scmp.eq.s32.totalorder %s20, 0
      %p167 = por %p165, %p166
      %p168 = scmp.ne.s32.totalorder %s156, %s157
      %p169 = scmp.eq.s32.totalorder %s21, 3
      %p170 = por %p168, %p169
      %p172 = scmp.ne.s32.totalorder %s157, %s171
      %p173 = scmp.eq.s32.totalorder %s21, 0
      %p174 = por %p172, %p173
      %s175 = ssub.s32 %s22, %s34
      %s176 = ssub.s32 %s23, %s30
      %s177 = sor.u32 %s175, %s176
      %p178 = scmp.eq.s32.totalorder %s177, 0
      %s180 = sadd.s32 %s179, 1
      %s181 = scalar_select %p178, %s179, %s180
      %p184 = pneg %p178
      %p185 = scmp.eq.s32.totalorder %s15, 3
      %p186 = por %p184, %p185
      %p187 = scmp.ne.s32.totalorder %s179, %s182
      %p188 = scmp.eq.s32.totalorder %s15, 0
      %p189 = por %p187, %p188
      %p190 = scmp.ne.s32.totalorder %s179, %s182
      %p191 = scmp.eq.s32.totalorder %s20, 3
      %p192 = por %p190, %p191
      %p193 = scmp.ne.s32.totalorder %s182, %s183
      %p194 = scmp.eq.s32.totalorder %s20, 0
      %p195 = por %p193, %p194
      %p196 = scmp.ne.s32.totalorder %s182, %s183
      %p197 = scmp.eq.s32.totalorder %s21, 3
      %p198 = por %p196, %p197
      %p200 = scmp.ne.s32.totalorder %s183, %s199
      %p201 = scmp.eq.s32.totalorder %s21, 0
      %p202 = por %p200, %p201
      %p203 = scmp.le.s32.totalorder 1, %s15
      %p204 = scmp.lt.s32.totalorder %s15, 5
      %p205 = pnand %p203, %p204
      %p206 = pneg %p205
      // Predicated region
      $region9: #{res_stack_forward.1} parent=5 // pred_check
        _
      $region10: #{res_stack_forward.1} parent=5 // pred_check_branch
        %208 = sbr.rel (%p205) target = $region12
      $region11: #{res_stack_forward.1} parent=5 // pred_region
        %s209 = ssub.s32 %s15, 1
        // Predicated region
        $region13: #{res_stack_forward.1} parent=11 // pred_check
          %p210 = pneg %p104
        $region14: #{res_stack_forward.1} parent=11 // pred_check_branch
          %212 = sbr.rel (%p210) target = $region16
        $region15: #{res_stack_forward.1} parent=11 // pred_region
          _
        $region16: #{res_stack_forward.1} parent=11 // pred_fallthru
          _
        // Predicated region
        $region17: #{res_stack_forward.1} parent=11 // pred_check
          %p213 = pneg %p125
        $region18: #{res_stack_forward.1} parent=11 // pred_check_branch
          %215 = sbr.rel (%p213) target = $region20
        $region19: #{res_stack_forward.1} parent=11 // pred_region
          _
        $region20: #{res_stack_forward.1} parent=11 // pred_fallthru
          _
        // Predicated region
        $region21: #{res_stack_forward.1} parent=11 // pred_check
          %p216 = pneg %p146
        $region22: #{res_stack_forward.1} parent=11 // pred_check_branch
          %218 = sbr.rel (%p216) target = $region24
        $region23: #{res_stack_forward.1} parent=11 // pred_region
          _
        $region24: #{res_stack_forward.1} parent=11 // pred_fallthru
          _
        // Predicated region
        $region25: #{res_stack_forward.1} parent=11 // pred_check
          %p219 = pneg %p167
        $region26: #{res_stack_forward.1} parent=11 // pred_check_branch
          %221 = sbr.rel (%p219) target = $region28
        $region27: #{res_stack_forward.1} parent=11 // pred_region
          _
        $region28: #{res_stack_forward.1} parent=11 // pred_fallthru
          _
      $region12: #{res_stack_forward.1} parent=5 // pred_fallthru
        _
      %p222 = scmp.lt.s32.totalorder %s15, 4
      // Predicated region
      $region29: #{res_stack_forward.1} parent=5 // pred_check
        %p223 = pneg %p222
      $region30: #{res_stack_forward.1} parent=5 // pred_check_branch
        %225 = sbr.rel (%p223) target = $region32
      $region31: #{res_stack_forward.1} parent=5 // pred_region
        // Predicated region
        $region33: #{res_stack_forward.1} parent=31 // pred_check
          %p226 = pneg %p49
        $region34: #{res_stack_forward.1} parent=31 // pred_check_branch
          %228 = sbr.rel (%p226) target = $region36
        $region35: #{res_stack_forward.1} parent=31 // pred_region
          %p229 = scmp.lt.s32.totalorder %s22, 1
          %s230 = scalar_select %p229, %s22, 1
          %p231 = scmp.lt.s32.totalorder %s23, 1
          %s232 = scalar_select %p231, %s23, 1
          %s233 = smul.addr %s230, 2
          %s234 = sadd.s32 %s232, %s233
          %s235 = smul.addr %s234, 8
          %s236 = scalar_lea.vmem %s0, %s235
        $region36: #{res_stack_forward.1} parent=31 // pred_fallthru
          _
        // Predicated region
        $region37: #{res_stack_forward.1} parent=31 // pred_check
          %p237 = pneg %p77
        $region38: #{res_stack_forward.1} parent=31 // pred_check_branch
          %239 = sbr.rel (%p237) target = $region40
        $region39: #{res_stack_forward.1} parent=31 // pred_region
          %p240 = scmp.lt.s32.totalorder %s22, 1
          %s241 = scalar_select %p240, %s22, 1
          %p242 = scmp.lt.s32.totalorder %s23, 1
          %s243 = scalar_select %p242, %s23, 1
          %s244 = smul.addr %s241, 2
          %s245 = sadd.s32 %s243, %s244
          %s246 = smul.addr %s245, 8
          %s247 = scalar_lea.vmem %s1, %s246
        $region40: #{res_stack_forward.1} parent=31 // pred_fallthru
          _
      $region32: #{res_stack_forward.1} parent=5 // pred_fallthru
        _
      %p248 = scmp.le.s32.totalorder 1, %s15
      %p249 = scmp.lt.s32.totalorder %s15, 5
      %p250 = pnand %p248, %p249
      %p251 = pneg %p250
      // Predicated region
      $region41: #{res_stack_forward.1} parent=5 // pred_check
        _
      $region42: #{res_stack_forward.1} parent=5 // pred_check_branch
        %253 = sbr.rel (%p250) target = $region44
      $region43: #{res_stack_forward.1} parent=5 // pred_region
        %s254 = ssub.s32 %s15, 1
        %p255 = scmp.lt.s32.totalorder %s24, 1
        %s256 = scalar_select %p255, %s24, 1
        %p257 = scmp.lt.s32.totalorder %s25, 1
        %s258 = scalar_select %p257, %s25, 1
        %s259 = smul.addr %s256, 2
        %s260 = sadd.s32 %s258, %s259
        %s261 = smul.addr %s260, 8
        %s262 = scalar_lea.vmem %s0, %s261
        %p263 = pneg %p55
        %p264 = pneg %p52
        %p265 = scmp.lt.s32.totalorder %s24, 1
        %s266 = scalar_select %p265, %s24, 1
        %p267 = scmp.lt.s32.totalorder %s25, 1
        %s268 = scalar_select %p267, %s25, 1
        %s269 = smul.addr %s266, 2
        %s270 = sadd.s32 %s268, %s269
        %s271 = smul.addr %s270, 8
        %s272 = scalar_lea.vmem %s1, %s271
        %p273 = pneg %p83
        %p274 = pneg %p80
        %p275 = pneg %p104
        %p276 = pneg %p101
        %p277 = pneg %p125
        %p278 = pneg %p122
        %p279 = pneg %p146
        %p280 = pneg %p143
        %p281 = pneg %p167
        %p282 = pneg %p164
        %p283 = pneg %p195
        %p284 = pneg %p192
        %s285 = sand.u32 %s182, 1
        %s286 = scalar_lea.sflag [#allocation3], %s285
        %s287 = sand.u32 %s182, 1
        %s288 = smul.addr %s287, 8
        %s289 = scalar_lea.vmem [#allocation2], %s288
        %p290 = scmp.lt.s32.totalorder %s24, 1
        %s291 = scalar_select %p290, %s24, 1
        %p292 = scmp.lt.s32.totalorder %s25, 1
        %s293 = scalar_select %p292, %s25, 1
        %s294 = smul.addr %s291, 2
        %s295 = sadd.s32 %s293, %s294
        %s296 = smul.addr %s295, 8
        %s297 = scalar_lea.vmem %s0, %s296
        %p298 = scmp.lt.s32.totalorder %s24, 1
        %s299 = scalar_select %p298, %s24, 1
        %p300 = scmp.lt.s32.totalorder %s25, 1
        %s301 = scalar_select %p300, %s25, 1
        %s302 = smul.addr %s299, 2
        %s303 = sadd.s32 %s301, %s302
        %s304 = smul.addr %s303, 8
        %s305 = scalar_lea.vmem %s1, %s304
        %v306 = vld [vmem:[%s297] sm:$0xff]
        %v307 = vld [vmem:[%s305] sm:$0xff]
        %v308 = vmul.f32 %v306, 0.2
        %v309 = vmax.f32 %v306, %v308
        %v310 = vmul.f32 %v307, 0.2
        %v311 = vmax.f32 %v307, %v310
        %313 = vrot.lane.b32.xlu0 %v309, 3
        %v314 = vpop.permute.xlu0 %313
        %vm316 = vcmask 23552
        %v317 = vsel %vm316, %v311, %v314
        %318 = vrot.lane.b32.xlu0 %v309, 125
        %v319 = vpop.permute.xlu0 %318
        %322 = vrot.lane.b32.xlu0 %v311, 122
        %v323 = vpop.permute.xlu0 %322
        %vm325 = vcmask 1022976
        %v326 = vsel %vm325, %v319, %v323
        %v327 = vld [vmem:[%s2] sm:$0xff]
        %v328 = vld [vmem:[%s3] sm:$0xff]
        %330 = vset.pattern.permute.xlu0 0
        %331 = vperm.xlu0 %330, %v328
        %v332 = vpop.permute.xlu0 %331
        %vm334 = vcmask 195584
        %v336 = vsel %vm334, %v327, 0
        %338 = vmatprep.subr.mxu0 0.0
        %339 = vmatpush1.msra.mxu0 %v317
        %340 = vmatprep.subr.mxu0 0.0
        %341 = vmatpush1.msra.mxu0 %v309
        %342 = vmatprep.subr.mxu0 0.0
        %343 = vmatpush1.msra.mxu0 %v326
        %344 = vmatprep.subr.mxu0 0.0
        %345 = vmatpush1.msra.mxu0 0.0
        %346 = vmatprep.subr.mxu0 0.0
        %347 = vmatpush1.msra.mxu0 0.0
        %348 = vmatprep.subr.mxu0 0.0
        %349 = vmatpush1.msra.mxu0 0.0
        %350 = vmatprep.subr.mxu0 0.0
        %351 = vmatpush1.msra.mxu0 0.0
        %352 = vmatprep.subr.mxu0 0.0
        %353 = vmatpush1.msra.mxu0 0.0
        %354 = vmatprep.subr.mxu0 0.0
        %355 = vmatpush1.msra.mxu0 0.0
        %356 = vmatprep.subr.mxu0 0.0
        %357 = vmatpush1.msra.mxu0 0.0
        %358 = vmatprep.subr.mxu0 0.0
        %359 = vmatpush1.msra.mxu0 0.0
        %360 = vmatprep.subr.mxu0 0.0
        %361 = vmatpush1.msra.mxu0 0.0
        %362 = vmatprep.subr.mxu0 0.0
        %363 = vmatpush1.msra.mxu0 0.0
        %364 = vmatprep.subr.mxu0 0.0
        %365 = vmatpush1.msra.mxu0 0.0
        %366 = vmatprep.subr.mxu0 0.0
        %367 = vmatpush1.msra.mxu0 0.0
        %368 = vmatprep.subr.mxu0 0.0
        %369 = vmatpush1.msra.mxu0 0.0
        %370 = vmatprep.subr.mxu0 0.0
        %371 = vmatpush1.msra.mxu0 0.0
        %372 = vmatprep.subr.mxu0 0.0
        %373 = vmatpush1.msra.mxu0 0.0
        %374 = vmatprep.subr.mxu0 0.0
        %375 = vmatpush1.msra.mxu0 0.0
        %376 = vmatprep.subr.mxu0 0.0
        %377 = vmatpush1.msra.mxu0 0.0
        %378 = vmatprep.subr.mxu0 0.0
        %379 = vmatpush1.msra.mxu0 0.0
        %380 = vmatprep.subr.mxu0 0.0
        %381 = vmatpush1.msra.mxu0 0.0
        %382 = vmatprep.subr.mxu0 0.0
        %383 = vmatpush1.msra.mxu0 0.0
        %384 = vmatprep.subr.mxu0 0.0
        %385 = vmatpush1.msra.mxu0 0.0
        %386 = vmatprep.subr.mxu0 0.0
        %387 = vmatpush1.msra.mxu0 0.0
        %388 = vmatprep.subr.mxu0 0.0
        %389 = vmatpush1.msra.mxu0 0.0
        %390 = vmatprep.subr.mxu0 0.0
        %391 = vmatpush1.msra.mxu0 0.0
        %392 = vmatprep.subr.mxu0 0.0
        %393 = vmatpush1.msra.mxu0 0.0
        %394 = vmatprep.subr.mxu0 0.0
        %395 = vmatpush1.msra.mxu0 0.0
        %396 = vmatprep.subr.mxu0 0.0
        %397 = vmatpush1.msra.mxu0 0.0
        %398 = vmatprep.subr.mxu0 0.0
        %399 = vmatpush1.msra.mxu0 0.0
        %400 = vmatprep.subr.mxu0 0.0
        %401 = vmatpush1.msra.mxu0 0.0
        %402 = vmatprep.mubr.f32.mxu0 0.0
        %403 = vmatmul.mubr.f32.gmra.mrb[0].mxu0 %v336
        %v404 = vpop.f32.mrb[0].mxu0
        %v405 = vadd.f32 %v332, %v404
        %v406 = vpop.f32.mrb[0].mxu0
        %407 = vdwg.mxu0
        %v408 = vmul.f32 %v405, 0.2
        %v409 = vmax.f32 %v405, %v408
        %v410 = vld [vmem:[%s4] sm:$0xff]
        %v411 = vld [vmem:[%s5] sm:$0xff]
        %413 = vset.pattern.permute.xlu0 0
        %414 = vperm.xlu0 %413, %v411
        %v415 = vpop.permute.xlu0 %414
        %vm417 = vcmask 130048
        %v419 = vsel %vm417, %v410, 0
        %421 = vmatprep.subr.mxu0 0.0
        %422 = vmatpush1.msra.mxu0 %v306
        %423 = vmatprep.subr.mxu0 0.0
        %424 = vmatpush1.msra.mxu0 %v409
        %425 = vmatprep.subr.mxu0 0.0
        %426 = vmatpush1.msra.mxu0 0.0
        %427 = vmatprep.subr.mxu0 0.0
        %428 = vmatpush1.msra.mxu0 0.0
        %429 = vmatprep.subr.mxu0 0.0
        %430 = vmatpush1.msra.mxu0 0.0
        %431 = vmatprep.subr.mxu0 0.0
        %432 = vmatpush1.msra.mxu0 0.0
        %433 = vmatprep.subr.mxu0 0.0
        %434 = vmatpush1.msra.mxu0 0.0
        %435 = vmatprep.subr.mxu0 0.0
        %436 = vmatpush1.msra.mxu0 0.0
        %437 = vmatprep.subr.mxu0 0.0
        %438 = vmatpush1.msra.mxu0 0.0
        %439 = vmatprep.subr.mxu0 0.0
        %440 = vmatpush1.msra.mxu0 0.0
        %441 = vmatprep.subr.mxu0 0.0
        %442 = vmatpush1.msra.mxu0 0.0
        %443 = vmatprep.subr.mxu0 0.0
        %444 = vmatpush1.msra.mxu0 0.0
        %445 = vmatprep.subr.mxu0 0.0
        %446 = vmatpush1.msra.mxu0 0.0
        %447 = vmatprep.subr.mxu0 0.0
        %448 = vmatpush1.msra.mxu0 0.0
        %449 = vmatprep.subr.mxu0 0.0
        %450 = vmatpush1.msra.mxu0 0.0
        %451 = vmatprep.subr.mxu0 0.0
        %452 = vmatpush1.msra.mxu0 0.0
        %453 = vmatprep.subr.mxu0 0.0
        %454 = vmatpush1.msra.mxu0 0.0
        %455 = vmatprep.subr.mxu0 0.0
        %456 = vmatpush1.msra.mxu0 0.0
        %457 = vmatprep.subr.mxu0 0.0
        %458 = vmatpush1.msra.mxu0 0.0
        %459 = vmatprep.subr.mxu0 0.0
        %460 = vmatpush1.msra.mxu0 0.0
        %461 = vmatprep.subr.mxu0 0.0
        %462 = vmatpush1.msra.mxu0 0.0
        %463 = vmatprep.subr.mxu0 0.0
        %464 = vmatpush1.msra.mxu0 0.0
        %465 = vmatprep.subr.mxu0 0.0
        %466 = vmatpush1.msra.mxu0 0.0
        %467 = vmatprep.subr.mxu0 0.0
        %468 = vmatpush1.msra.mxu0 0.0
        %469 = vmatprep.subr.mxu0 0.0
        %470 = vmatpush1.msra.mxu0 0.0
        %471 = vmatprep.subr.mxu0 0.0
        %472 = vmatpush1.msra.mxu0 0.0
        %473 = vmatprep.subr.mxu0 0.0
        %474 = vmatpush1.msra.mxu0 0.0
        %475 = vmatprep.subr.mxu0 0.0
        %476 = vmatpush1.msra.mxu0 0.0
        %477 = vmatprep.subr.mxu0 0.0
        %478 = vmatpush1.msra.mxu0 0.0
        %479 = vmatprep.subr.mxu0 0.0
        %480 = vmatpush1.msra.mxu0 0.0
        %481 = vmatprep.subr.mxu0 0.0
        %482 = vmatpush1.msra.mxu0 0.0
        %483 = vmatprep.subr.mxu0 0.0
        %484 = vmatpush1.msra.mxu0 0.0
        %485 = vmatprep.mubr.f32.mxu0 0.0
        %486 = vmatmul.mubr.f32.gmra.mrb[0].mxu0 %v419
        %v487 = vpop.f32.mrb[0].mxu0
        %v488 = vadd.f32 %v415, %v487
        %v489 = vpop.f32.mrb[0].mxu0
        %490 = vdwg.mxu0
        %491 = vst [vmem:[%s289] sm:$0xff] %v488
        %s492 = sand.u32 %s182, 1
        %s493 = scalar_lea.sflag [#allocation3], %s492
        %s494 = sand.u32 %s182, 1
        %s495 = smul.addr %s494, 8
        %s496 = scalar_lea.vmem [#allocation2], %s495
        // Predicated region
        $region45: #{res_stack_forward.1} parent=43 // pred_check
          %p497 = pneg %p192
        $region46: #{res_stack_forward.1} parent=43 // pred_check_branch
          %499 = sbr.rel (%p497) target = $region48
        $region47: #{res_stack_forward.1} parent=43 // pred_region
          %s501 = ssub.s32 128, 128
          %502 = vsyncadd %s493, %s501
          %s503 = smul.addr %s24, 2
          %s504 = sadd.s32 %s25, %s503
          %s505 = smul.addr %s504, 128
          %s506 = scalar_lea.hbm %s6, %s505
          %s508 = sshll.u32 %s496, 4
          %s509 = int_to_ptr.vmem [resolvable:$true] %s508
          %511 = dma.vmem_to_hbm [thread:$0]  %s509, 128, %s506, %s493
        $region48: #{res_stack_forward.1} parent=43 // pred_fallthru
          _
      $region44: #{res_stack_forward.1} parent=5 // pred_fallthru
        _
      %p512 = scmp.le.s32.totalorder 2, %s15
      // Predicated region
      $region49: #{res_stack_forward.1} parent=5 // pred_check
        %p513 = pneg %p512
      $region50: #{res_stack_forward.1} parent=5 // pred_check_branch
        %515 = sbr.rel (%p513) target = $region52
      $region51: #{res_stack_forward.1} parent=5 // pred_region
        %s516 = ssub.s32 %s15, 2
        // Predicated region
        $region53: #{res_stack_forward.1} parent=51 // pred_check
          %p517 = pneg %p198
        $region54: #{res_stack_forward.1} parent=51 // pred_check_branch
          %519 = sbr.rel (%p517) target = $region56
        $region55: #{res_stack_forward.1} parent=51 // pred_region
          %s520 = sand.u32 %s183, 1
          %s521 = scalar_lea.sflag [#allocation3], %s520
          %s522 = sand.u32 %s183, 1
          %s523 = smul.addr %s522, 8
          %s524 = scalar_lea.vmem [#allocation2], %s523
          %525 = dma.done %s521, 128
        $region56: #{res_stack_forward.1} parent=51 // pred_fallthru
          _
      $region52: #{res_stack_forward.1} parent=5 // pred_fallthru
        _
    $region6: #{res_stack_forward.1} parent=1 // loop_footer
      %s19 = sadd.s32 1, %s15
    $region7: #{res_stack_forward.1} parent=1 // loop_footer_branch
      %14 = sbr.rel target = $region3
    $region8: #{res_stack_forward.1} parent=1 // loop_exit
      _
    %526 = vsyncpa [#allocation3], 1
    %s527 = scalar_lea.sflag [#allocation3], 1
    %528 = vsyncpa %s527, 1

</llo_original>
